<compile_context>
chip_gen: v7x
topology: tpu7x:2x2x1
jax: 0.10.0
libtpu: 0.0.40
codegen_flags: <defaults>
</compile_context>

<pallas_src>
import jax
import jax.numpy as jnp
from jax import lax
from jax.experimental import pallas as pl
from jax.experimental.pallas import tpu as pltpu


_MXU_WEIGHTED_SUM_MIN_T = 128  # use the MXU for the score@x contraction past this


def _attention_kernel(x_ref,       # VMEM (bb, T, D) f32
                      len_ref,     # VMEM (bb, 1)    int32
                      w1t_ref,     # VMEM (D, A)     f32
                      b1_ref,      # VMEM (1, A)     f32
                      w2_ref,      # VMEM (1, A)     f32
                      out_ref,     # VMEM (bb, D)    f32
                      score_ref):  # VMEM (bb, T)    f32   (lane-dense)
    bb, T, D = x_ref.shape

    x = x_ref[...]                                   # (bb, T, D)
    # Free reshape: the wrapper guarantees T % 8 == 0, so merging (bb, T) onto
    # the sublane axis is a tile reinterpretation, not a VMEM copy.
    x2 = x.reshape(bb * T, D)

    # First layer on the MXU: (bb*T, D) @ (D, A) + b1, tanh on the VPU/EUP.
    h = jnp.tanh(
        jnp.dot(x2, w1t_ref[...], preferred_element_type=jnp.float32) + b1_ref[...]
    )                                                # (bb*T, A)

    # Context layer (output width 1): VPU multiply + lane reduce instead of an
    # N=1 MXU matmul.  b_ctx cancels in the softmax and is omitted.
    att = jnp.sum(h * w2_ref[...], axis=-1, keepdims=True)       # (bb*T, 1)
    att = att.reshape(bb, T)                                      # lane-dense (bb, T)

    # Masked softmax over T (matches _masked_softmax: exp * mask / sum),
    # computed lane-dense so exp/cmp/mul run at full lane utilization.
    t_idx = lax.broadcasted_iota(jnp.int32, (bb, T), 1)
    mask = (t_idx < len_ref[...]).astype(jnp.float32)             # (bb, T)
    e = jnp.exp(att) * mask                                       # (bb, T)
    denom = jnp.sum(e, axis=-1, keepdims=True)                    # (bb, 1)
    # NOTE: rows with seq_len == 0 divide by zero (same as the PyTorch reference).
    score = e * pl.reciprocal(denom, approx=False)                # (bb, T)

    # Weighted sum over T.
    if T >= _MXU_WEIGHTED_SUM_MIN_T:
        # MXU contraction (batched (1,T)@(T,D)); frees VALU/XLU slots so the
        # epilogue hides under the next block's DMA.
        weighted = jnp.einsum("bqt,btd->bqd", score[:, None, :], x,
                              preferred_element_type=jnp.float32)[:, 0, :]
    else:
        # Small T: VPU multiply + sublane reduce beats an M=1 MXU matmul.
        weighted = jnp.sum(score[:, :, None] * x, axis=1)         # (bb, D)

    out_ref[...] = weighted.astype(out_ref.dtype)
    score_ref[...] = score.astype(score_ref.dtype)                # lane-dense store


def _choose_block_batch(B, T_pad, D):
    """Static choice of batch rows per grid step."""
    row_bytes = max(T_pad * D * 4, 1)
    # Size blocks by bytes: ~4 MiB per x block.  Measured pipelined kernels hit
    # ~85% of the HBM roofline at 2-4 MiB blocks vs ~30-60% at sub-MiB blocks.
    bb = max(1, (4 * 1024 * 1024) // row_bytes)
    # Guarantee >= 2 grid blocks when the batch permits, so the "parallel" grid
    # axis can be split across v7x's two TensorCores (no-op on v5e/v6e).
    if B >= 16:
        half = -(-B // 2)
        half = -(-half // 8) * 8
        bb = min(bb, half)
    if bb >= B:
        return B                       # a single block covers the whole batch
    # A blocked (non-full) batch dim on the sublane axis of the 2-D outputs
    # must be a multiple of 8.
    return max(8, (bb // 8) * 8)


def _vmem_limit_bytes(bb, T_pad, D, A):
    """Explicit scoped-VMEM budget: 2x headroom over the double-buffered blocks,
    clamped to stay inside v7x's 64 MiB physical VMEM."""
    x_blk = bb * T_pad * D * 4
    io_blk = bb * (D + T_pad + 1) * 4
    w_blk = (D * A + 2 * A) * 4
    need = 2 * (x_blk + io_blk + w_blk)          # double-buffered
    return int(min(max(2 * need, 32 << 20), 56 << 20))


@jax.jit
def attention_with_context(seq_enc, seq_len, w_lin, b_lin, w_ctx, b_ctx):
    """seq_enc: (B, T, D) f32; seq_len: (B,) int32 (each entry must be >= 1).
    w_lin: (A, D), b_lin: (A,), w_ctx: (1, A), b_ctx: (1,)  (PyTorch nn.Linear layout).
    Returns (enc_weighted (B, D), score (B, T))."""
    B, T, D = seq_enc.shape
    A = w_lin.shape[0]

    # Pad T to a multiple of 8 so the in-kernel (bb,T,D)->(bb*T,D) merge never
    # crosses sublane-tile padding (no hidden VMEM copy).  Padded timesteps are
    # zeroed and masked out of the softmax, so outputs are unchanged.
    T_pad = -(-T // 8) * 8

    bb = _choose_block_batch(B, T_pad, D)
    nb = -(-B // bb)
    B_pad = nb * bb

    x = jnp.asarray(seq_enc, jnp.float32)
    lens = jnp.asarray(seq_len, jnp.int32)
    if B_pad != B or T_pad != T:
        x = jnp.pad(x, ((0, B_pad - B), (0, T_pad - T), (0, 0)))
    if B_pad != B:
        # Padded batch rows get seq_len = T so their masked softmax stays finite;
        # they are sliced off before returning.
        lens = jnp.pad(lens, (0, B_pad - B), constant_values=max(T, 1))
    lens2 = lens.reshape(B_pad, 1)

    # Pre-transpose the first-layer weight so the kernel does a row-major matmul.
    w1t = jnp.asarray(w_lin, jnp.float32).T                  # (D, A)
    b1 = jnp.asarray(b_lin, jnp.float32).reshape(1, A)       # (1, A)
    w2 = jnp.asarray(w_ctx, jnp.float32).reshape(1, A)       # (1, A) row for the VPU
    del b_ctx  # cancels in exp(att) / sum(exp(att)); no effect on either output

    # Constant-index weight block: single-buffer it when large so default
    # double-buffering doesn't reserve 2x its size of VMEM.
    if D * A * 4 >= (1 << 20):
        w1_spec = pl.BlockSpec((D, A), lambda i: (0, 0), pipeline_mode=pl.Buffered(1))
    else:
        w1_spec = pl.BlockSpec((D, A), lambda i: (0, 0))

    out, score = pl.pallas_call(
        _attention_kernel,
        out_shape=(
            jax.ShapeDtypeStruct((B_pad, D), jnp.float32),
            jax.ShapeDtypeStruct((B_pad, T_pad), jnp.float32),
        ),
        grid=(nb,),
        in_specs=[
            pl.BlockSpec((bb, T_pad, D), lambda i: (i, 0, 0)),
            pl.BlockSpec((bb, 1), lambda i: (i, 0)),
            w1_spec,
            pl.BlockSpec((1, A), lambda i: (0, 0)),
            pl.BlockSpec((1, A), lambda i: (0, 0)),
        ],
        out_specs=(
            pl.BlockSpec((bb, D), lambda i: (i, 0)),
            pl.BlockSpec((bb, T_pad), lambda i: (i, 0)),
        ),
        compiler_params=pltpu.CompilerParams(
            dimension_semantics=("parallel",),   # v7x: batch blocks split across 2 TCs
            vmem_limit_bytes=_vmem_limit_bytes(bb, T_pad, D, A),
        ),
    )(x, lens2, w1t, b1, w2)

    return out[:B], score[:B, :T]


def _reference(seq_enc, seq_len, w_lin, b_lin, w_ctx, b_ctx):
    """Pure-JAX reference mirroring the PyTorch module."""
    att = jnp.tanh(seq_enc @ w_lin.T + b_lin)               # (B, T, A)
    att = (att @ w_ctx.T + b_ctx)[..., 0]                   # (B, T)
    T = seq_enc.shape[1]
    mask = (jnp.arange(T)[None, :] < seq_len[:, None]).astype(att.dtype)
    sc = jnp.exp(att) * mask
    score = sc / jnp.sum(sc, axis=-1, keepdims=True)
    out = jnp.sum(score[..., None] * seq_enc, axis=1)
    return out, score


def _make_params(key, D, A):
    k_w1, k_b1, k_w2, k_b2 = jax.random.split(key, 4)
    lim_w1 = (6.0 / (D + A)) ** 0.5                          # xavier_uniform for (A, D)
    w_lin = jax.random.uniform(k_w1, (A, D), jnp.float32, -lim_w1, lim_w1)
    lim_b1 = 1.0 / (D ** 0.5)                                # default Linear bias init
    b_lin = jax.random.uniform(k_b1, (A,), jnp.float32, -lim_b1, lim_b1)
    lim_w2 = (6.0 / (A + 1)) ** 0.5                          # xavier_uniform for (1, A)
    w_ctx = jax.random.uniform(k_w2, (1, A), jnp.float32, -lim_w2, lim_w2)
    lim_b2 = 1.0 / (A ** 0.5)
    b_ctx = jax.random.uniform(k_b2, (1,), jnp.float32, -lim_b2, lim_b2)
    return w_lin, b_lin, w_ctx, b_ctx


def _check(out, score, ref_out, ref_score):
    assert out.shape == ref_out.shape and score.shape == ref_score.shape
    assert jnp.allclose(out, ref_out, atol=1e-5, rtol=1e-5)
    assert jnp.allclose(score, ref_score, atol=1e-5, rtol=1e-5)


if __name__ == "__main__":
    # Case 1: small shapes consistent with the module (batch=2, seq=8, D=32, A=16).
    B, T, D, A = 2, 8, 32, 16
    k_x, k_p = jax.random.split(jax.random.PRNGKey(0))
    seq_enc = jax.random.normal(k_x, (B, T, D), dtype=jnp.float32)
    seq_len = jnp.array([5, 8], dtype=jnp.int32)
    params = _make_params(k_p, D, A)

    out, score = attention_with_context(seq_enc, seq_len, *params)
    out, score = jax.block_until_ready((out, score))
    ref_out, ref_score = _reference(seq_enc, seq_len, *params)
    _check(out, score, ref_out, ref_score)
    assert jnp.allclose(score[0, 5:], 0.0)   # masked positions carry zero weight

    # Case 2: multi-block grid (>= 2 blocks) + batch padding (B % bb != 0).
    B2, T2, D2, A2 = 84, 8, 32, 16
    k_x2, k_p2, k_l2 = jax.random.split(jax.random.PRNGKey(1), 3)
    seq_enc2 = jax.random.normal(k_x2, (B2, T2, D2), dtype=jnp.float32)
    seq_len2 = jax.random.randint(k_l2, (B2,), 1, T2 + 1).astype(jnp.int32)
    params2 = _make_params(k_p2, D2, A2)
    out2, score2 = attention_with_context(seq_enc2, seq_len2, *params2)
    out2, score2 = jax.block_until_ready((out2, score2))
    _check(out2, score2, *_reference(seq_enc2, seq_len2, *params2))

    # Case 3: T not a multiple of 8 (exercises the wrapper-side T padding path).
    B3, T3, D3, A3 = 4, 12, 32, 16
    k_x3, k_p3, k_l3 = jax.random.split(jax.random.PRNGKey(2), 3)
    seq_enc3 = jax.random.normal(k_x3, (B3, T3, D3), dtype=jnp.float32)
    seq_len3 = jax.random.randint(k_l3, (B3,), 1, T3 + 1).astype(jnp.int32)
    params3 = _make_params(k_p3, D3, A3)
    out3, score3 = attention_with_context(seq_enc3, seq_len3, *params3)
    out3, score3 = jax.block_until_ready((out3, score3))
    _check(out3, score3, *_reference(seq_enc3, seq_len3, *params3))

    print("KERNEL_OK")
</pallas_src>

<mosaic_0001>
module attributes {stable_mosaic.version = 11 : i64} {
  func.func @_attention_kernel(%arg0: i32, %arg1: memref<2x8x32xf32, #tpu.memory_space<vmem>>, %arg2: memref<2x1xi32, #tpu.memory_space<vmem>>, %arg3: memref<32x16xf32, #tpu.memory_space<vmem>>, %arg4: memref<1x16xf32, #tpu.memory_space<vmem>>, %arg5: memref<1x16xf32, #tpu.memory_space<vmem>>, %arg6: memref<2x32xf32, #tpu.memory_space<vmem>>, %arg7: memref<2x8xf32, #tpu.memory_space<vmem>>) attributes {dimension_semantics = [#tpu.dimension_semantics<parallel>], iteration_bounds = array<i64: 1>, scalar_prefetch = 0 : i64, scratch_operands = 0 : i64, tpu.core_type = #tpu.core_type<tc>, window_params = [{transform_indices = @transform_0, window_bounds = array<i64: 2, 8, 32>}, {transform_indices = @transform_1, window_bounds = array<i64: 2, 1>}, {pipeline_mode = #tpu.pipeline_mode<synchronous>, transform_indices = @transform_2, window_bounds = array<i64: 32, 16>}, {pipeline_mode = #tpu.pipeline_mode<synchronous>, transform_indices = @transform_3, window_bounds = array<i64: 1, 16>}, {pipeline_mode = #tpu.pipeline_mode<synchronous>, transform_indices = @transform_4, window_bounds = array<i64: 1, 16>}, {transform_indices = @transform_5, window_bounds = array<i64: 2, 32>}, {transform_indices = @transform_6, window_bounds = array<i64: 2, 8>}]} {
    %c0 = arith.constant 0 : index
    %c0_0 = arith.constant 0 : index
    %c0_1 = arith.constant 0 : index
    %0 = vector.load %arg1[%c0, %c0_0, %c0_1] : memref<2x8x32xf32, #tpu.memory_space<vmem>>, vector<2x8x32xf32>
    %1 = vector.shape_cast %0 : vector<2x8x32xf32> to vector<16x32xf32>
    %c0_2 = arith.constant 0 : index
    %c0_3 = arith.constant 0 : index
    %2 = vector.load %arg3[%c0_2, %c0_3] : memref<32x16xf32, #tpu.memory_space<vmem>>, vector<32x16xf32>
    %cst = arith.constant dense<0.000000e+00> : vector<16x16xf32>
    %3 = tpu.matmul %1, %2, %cst {dimension_numbers = #tpu.dot_dimension_numbers<[1], [0], [0], [1], [0, 0, 1, 1], [], []>} : vector<16x32xf32>, vector<32x16xf32>, vector<16x16xf32> -> vector<16x16xf32>
    %c0_4 = arith.constant 0 : index
    %c0_5 = arith.constant 0 : index
    %4 = vector.load %arg4[%c0_4, %c0_5] : memref<1x16xf32, #tpu.memory_space<vmem>>, vector<1x16xf32>
    %5 = vector.broadcast %4 : vector<1x16xf32> to vector<16x16xf32>
    %6 = arith.addf %3, %5 : vector<16x16xf32>
    %7 = math.tanh %6 : vector<16x16xf32>
    %c0_6 = arith.constant 0 : index
    %c0_7 = arith.constant 0 : index
    %8 = vector.load %arg5[%c0_6, %c0_7] : memref<1x16xf32, #tpu.memory_space<vmem>>, vector<1x16xf32>
    %9 = vector.broadcast %8 : vector<1x16xf32> to vector<16x16xf32>
    %10 = arith.mulf %7, %9 : vector<16x16xf32>
    %cst_8 = arith.constant dense<0.000000e+00> : vector<16xf32>
    %11 = vector.multi_reduction <add>, %10, %cst_8 [1] : vector<16x16xf32> to vector<16xf32>
    %12 = vector.shape_cast %11 : vector<16xf32> to vector<16x1xf32>
    %13 = vector.shape_cast %12 : vector<16x1xf32> to vector<2x8xf32>
    %14 = tpu.iota {dimensions = array<i32: 1>} : vector<2x8xi32>
    %c0_9 = arith.constant 0 : index
    %c0_10 = arith.constant 0 : index
    %15 = vector.load %arg2[%c0_9, %c0_10] : memref<2x1xi32, #tpu.memory_space<vmem>>, vector<2x1xi32>
    %16 = vector.broadcast %15 : vector<2x1xi32> to vector<2x8xi32>
    %17 = arith.cmpi slt, %14, %16 : vector<2x8xi32>
    %18 = arith.extui %17 : vector<2x8xi1> to vector<2x8xi32>
    %19 = arith.sitofp %18 : vector<2x8xi32> to vector<2x8xf32>
    %20 = math.exp %13 : vector<2x8xf32>
    %21 = arith.mulf %20, %19 : vector<2x8xf32>
    %cst_11 = arith.constant dense<0.000000e+00> : vector<2xf32>
    %22 = vector.multi_reduction <add>, %21, %cst_11 [1] : vector<2x8xf32> to vector<2xf32>
    %23 = vector.shape_cast %22 : vector<2xf32> to vector<2x1xf32>
    %24 = tpu.reciprocal %23 : vector<2x1xf32> -> vector<2x1xf32>
    %25 = vector.broadcast %24 : vector<2x1xf32> to vector<2x8xf32>
    %26 = arith.mulf %21, %25 : vector<2x8xf32>
    %27 = vector.shape_cast %26 : vector<2x8xf32> to vector<2x8x1xf32>
    %28 = vector.broadcast %27 : vector<2x8x1xf32> to vector<2x8x32xf32>
    %29 = arith.mulf %28, %0 : vector<2x8x32xf32>
    %cst_12 = arith.constant dense<0.000000e+00> : vector<2x32xf32>
    %30 = vector.multi_reduction <add>, %29, %cst_12 [1] : vector<2x8x32xf32> to vector<2x32xf32>
    %c0_13 = arith.constant 0 : index
    %c0_14 = arith.constant 0 : index
    %31 = vector.load %arg6[%c0_13, %c0_14] : memref<2x32xf32, #tpu.memory_space<vmem>>, vector<2x32xf32>
    tpu.vector_store %arg6[%c0_13, %c0_14], %30 {strides = array<i32>} : memref<2x32xf32, #tpu.memory_space<vmem>>, vector<2x32xf32>,
    %c0_15 = arith.constant 0 : index
    %c0_16 = arith.constant 0 : index
    %32 = vector.load %arg7[%c0_15, %c0_16] : memref<2x8xf32, #tpu.memory_space<vmem>>, vector<2x8xf32>
    tpu.vector_store %arg7[%c0_15, %c0_16], %26 {strides = array<i32>} : memref<2x8xf32, #tpu.memory_space<vmem>>, vector<2x8xf32>,
    return
  }
  func.func @transform_0(%arg0: i32) -> (i32, i32, i32) {
    %c0_i32 = arith.constant 0 : i32
    %c0_i32_0 = arith.constant 0 : i32
    %c0_i32_1 = arith.constant 0 : i32
    return %arg0, %c0_i32, %c0_i32_0 : i32, i32, i32
  }
  func.func @transform_1(%arg0: i32) -> (i32, i32) {
    %c0_i32 = arith.constant 0 : i32
    %c0_i32_0 = arith.constant 0 : i32
    return %arg0, %c0_i32 : i32, i32
  }
  func.func @transform_2(%arg0: i32) -> (i32, i32) {
    %c0_i32 = arith.constant 0 : i32
    %c0_i32_0 = arith.constant 0 : i32
    %c0_i32_1 = arith.constant 0 : i32
    return %c0_i32, %c0_i32_0 : i32, i32
  }
  func.func @transform_3(%arg0: i32) -> (i32, i32) {
    %c0_i32 = arith.constant 0 : i32
    %c0_i32_0 = arith.constant 0 : i32
    %c0_i32_1 = arith.constant 0 : i32
    return %c0_i32, %c0_i32_0 : i32, i32
  }
  func.func @transform_4(%arg0: i32) -> (i32, i32) {
    %c0_i32 = arith.constant 0 : i32
    %c0_i32_0 = arith.constant 0 : i32
    %c0_i32_1 = arith.constant 0 : i32
    return %c0_i32, %c0_i32_0 : i32, i32
  }
  func.func @transform_5(%arg0: i32) -> (i32, i32) {
    %c0_i32 = arith.constant 0 : i32
    %c0_i32_0 = arith.constant 0 : i32
    return %arg0, %c0_i32 : i32, i32
  }
  func.func @transform_6(%arg0: i32) -> (i32, i32) {
    %c0_i32 = arith.constant 0 : i32
    %c0_i32_0 = arith.constant 0 : i32
    return %arg0, %c0_i32 : i32, i32
  }
}

</mosaic_0001>

<llo_original>
// kernel: attention_with_context.1
$region0: #{attention_with_context.1}
  #allocation0 [shape = 'u32[]', space=smem, size = 0x4, offset = 0x4, fixed_abs, tag = 'smem constant byte address 0x4 - core index']
  #allocation1 [shape = 'u32[144,128]{1,0:T(1,128)}', space=vmem, size = 0x12000, scoped, tag = 'internal scratch']
  %s0 = inlined_call_operand.vmem [shape: f32[2,8,32], index: 0, kind: input, shape index: {}]
  %s1 = inlined_call_operand.vmem [shape: s32[2,1], index: 1, kind: input, shape index: {}]
  %s2 = inlined_call_operand.vmem [shape: f32[32,16], index: 2, kind: input, shape index: {}]
  %s3 = inlined_call_operand.vmem [shape: f32[1,16], index: 3, kind: input, shape index: {}]
  %s4 = inlined_call_operand.vmem [shape: f32[1,16], index: 4, kind: input, shape index: {}]
  %s5 = inlined_call_operand.hbm [shape: f32[2,32], index: 5, kind: output, shape index: {0}]
  %s6 = inlined_call_operand.hbm [shape: f32[2,8], index: 6, kind: output, shape index: {1}]
  %7 = xla_tuple %s5, %s6
  %s8 = sld [smem:[#allocation0]]
  $region38: #{attention_with_context.1} parent=0
    _
  %s10 = ssub.s32 1, %s8
  %s11 = scalar_select 0, %s10, %s8
  $region1: #{attention_with_context.1} parent=0
    #allocation2 [shape = 'u8[1024]{0}', space=vmem, size = 0x400, scoped, tag = 'output window, operand 0, single buffered']
    #allocation3 [shape = 's32[1]{0}', space=sflag, size = 0x4, scoped, tag = 'scoped memory for attention_with_context.1']
    #allocation4 [shape = 'u8[1024]{0}', space=vmem, size = 0x400, scoped, tag = 'output window, operand 1, single buffered']
    #allocation5 [shape = 's32[1]{0}', space=sflag, size = 0x4, scoped, tag = 'scoped memory for attention_with_context.1']
    %12 = vsyncpa [#allocation3], 0
    %13 = vsyncpa [#allocation5], 0
    // Predicated region
    $region2: #{attention_with_context.1} parent=1 // pred_check
      _
    $region3: #{attention_with_context.1} parent=1 // pred_check_branch
      %15 = sbr.rel (0) target = $region5
    $region4: #{attention_with_context.1} parent=1 // pred_region
      _
    $region5: #{attention_with_context.1} parent=1 // pred_fallthru
      _
    // Predicated region
    $region6: #{attention_with_context.1} parent=1 // pred_check
      _
    $region7: #{attention_with_context.1} parent=1 // pred_check_branch
      %17 = sbr.rel (0) target = $region9
    $region8: #{attention_with_context.1} parent=1 // pred_region
      _
    $region9: #{attention_with_context.1} parent=1 // pred_fallthru
      _
    // Predicated region
    $region10: #{attention_with_context.1} parent=1 // pred_check
      _
    $region11: #{attention_with_context.1} parent=1 // pred_check_branch
      %19 = sbr.rel (0) target = $region13
    $region12: #{attention_with_context.1} parent=1 // pred_region
      _
    $region13: #{attention_with_context.1} parent=1 // pred_fallthru
      _
    // Predicated region
    $region14: #{attention_with_context.1} parent=1 // pred_check
      _
    $region15: #{attention_with_context.1} parent=1 // pred_check_branch
      %21 = sbr.rel (0) target = $region17
    $region16: #{attention_with_context.1} parent=1 // pred_region
      _
    $region17: #{attention_with_context.1} parent=1 // pred_fallthru
      _
    // Predicated region
    $region18: #{attention_with_context.1} parent=1 // pred_check
      _
    $region19: #{attention_with_context.1} parent=1 // pred_check_branch
      %23 = sbr.rel (0) target = $region21
    $region20: #{attention_with_context.1} parent=1 // pred_region
      _
    $region21: #{attention_with_context.1} parent=1 // pred_fallthru
      _
    %v24 = vld [vmem:[%s0] sm:$0xff]
    %v25 = vld [vmem:[%s0 + $0x8] sm:$0xff]
    %v26 = vld [vmem:[%s2] sm:$0xff]
    %v27 = vld [vmem:[%s2 + $0x8] sm:$0xff]
    %v28 = vld [vmem:[%s2 + $0x10] sm:$0xff]
    %v29 = vld [vmem:[%s2 + $0x18] sm:$0xff]
    %v30 = vld [vmem:[%s3] sm:$0x1]
    %v32 = vlaneseq
    %v33 = vshrl.u32 %v32, 7
    %v34 = vsub.s32 0, %v33
    %v35 = vrot.slane %v30, %v34
    %vm37 = vcmask 261120
    %v39 = vsel %vm37, %v24, 0
    %v42 = vsel %vm37, %v25, 0
    %44 = vmatprep.subr.mxu0 0.0
    %45 = vmatpush1.msra.mxu0 %v26
    %46 = vmatprep.subr.mxu0 0.0
    %47 = vmatpush1.msra.mxu0 %v27
    %48 = vmatprep.subr.mxu0 0.0
    %49 = vmatpush1.msra.mxu0 %v28
    %50 = vmatprep.subr.mxu0 0.0
    %51 = vmatpush1.msra.mxu0 %v29
    %52 = vmatprep.subr.mxu0 0.0
    %53 = vmatpush1.msra.mxu0 0.0
    %54 = vmatprep.subr.mxu0 0.0
    %55 = vmatpush1.msra.mxu0 0.0
    %56 = vmatprep.subr.mxu0 0.0
    %57 = vmatpush1.msra.mxu0 0.0
    %58 = vmatprep.subr.mxu0 0.0
    %59 = vmatpush1.msra.mxu0 0.0
    %60 = vmatprep.subr.mxu0 0.0
    %61 = vmatpush1.msra.mxu0 0.0
    %62 = vmatprep.subr.mxu0 0.0
    %63 = vmatpush1.msra.mxu0 0.0
    %64 = vmatprep.subr.mxu0 0.0
    %65 = vmatpush1.msra.mxu0 0.0
    %66 = vmatprep.subr.mxu0 0.0
    %67 = vmatpush1.msra.mxu0 0.0
    %68 = vmatprep.subr.mxu0 0.0
    %69 = vmatpush1.msra.mxu0 0.0
    %70 = vmatprep.subr.mxu0 0.0
    %71 = vmatpush1.msra.mxu0 0.0
    %72 = vmatprep.subr.mxu0 0.0
    %73 = vmatpush1.msra.mxu0 0.0
    %74 = vmatprep.subr.mxu0 0.0
    %75 = vmatpush1.msra.mxu0 0.0
    %76 = vmatprep.subr.mxu0 0.0
    %77 = vmatpush1.msra.mxu0 0.0
    %78 = vmatprep.subr.mxu0 0.0
    %79 = vmatpush1.msra.mxu0 0.0
    %80 = vmatprep.subr.mxu0 0.0
    %81 = vmatpush1.msra.mxu0 0.0
    %82 = vmatprep.subr.mxu0 0.0
    %83 = vmatpush1.msra.mxu0 0.0
    %84 = vmatprep.subr.mxu0 0.0
    %85 = vmatpush1.msra.mxu0 0.0
    %86 = vmatprep.subr.mxu0 0.0
    %87 = vmatpush1.msra.mxu0 0.0
    %88 = vmatprep.subr.mxu0 0.0
    %89 = vmatpush1.msra.mxu0 0.0
    %90 = vmatprep.subr.mxu0 0.0
    %91 = vmatpush1.msra.mxu0 0.0
    %92 = vmatprep.subr.mxu0 0.0
    %93 = vmatpush1.msra.mxu0 0.0
    %94 = vmatprep.subr.mxu0 0.0
    %95 = vmatpush1.msra.mxu0 0.0
    %96 = vmatprep.subr.mxu0 0.0
    %97 = vmatpush1.msra.mxu0 0.0
    %98 = vmatprep.subr.mxu0 0.0
    %99 = vmatpush1.msra.mxu0 0.0
    %100 = vmatprep.subr.mxu0 0.0
    %101 = vmatpush1.msra.mxu0 0.0
    %102 = vmatprep.subr.mxu0 0.0
    %103 = vmatpush1.msra.mxu0 0.0
    %104 = vmatprep.subr.mxu0 0.0
    %105 = vmatpush1.msra.mxu0 0.0
    %106 = vmatprep.subr.mxu0 0.0
    %107 = vmatpush1.msra.mxu0 0.0
    %108 = vmatprep.mubr.f32.mxu0 0.0
    %109 = vmatmul.mubr.f32.gmra.mrb[0].mxu0 %v39
    %v110 = vpop.f32.mrb[0].mxu0
    %v111 = vadd.f32 %v35, %v110
    %v112 = vpop.f32.mrb[0].mxu0
    %113 = vmatprep.mubr.f32.mxu0 0.0
    %114 = vmatmul.mubr.f32.gmra.mrb[0].mxu0 %v42
    %v115 = vpop.f32.mrb[0].mxu0
    %v116 = vadd.f32 %v35, %v115
    %v117 = vpop.f32.mrb[0].mxu0
    %118 = vdwg.mxu0
    %v119 = vtanh.pop %v111
    %v120 = vtanh.pop %v116
    %v121 = vld [vmem:[%s4] sm:$0x1]
    %v123 = vlaneseq
    %v124 = vshrl.u32 %v123, 7
    %v125 = vsub.s32 0, %v124
    %v126 = vrot.slane %v121, %v125
    %v128 = vmul.f32 %v119, %v126
    %v129 = vmul.f32 %v120, %v126
    %vm130 = vcmask 130048
    %v131 = vsel %vm130, %v128, 0.0
    %132 = vadd.xlane.f32.xlu0 %v131
    %v133 = vpop.xlane.xlu0 %132
    %v134 = vsel %vm130, %v129, 0.0
    %135 = vadd.xlane.f32.xlu0 %v134
    %v136 = vpop.xlane.xlu0 %135
    %v137 = vlaneseq
    %v138 = vand.u32 %v137, 127
    %v139 = vld [vmem:[%s1] sm:$0x3]
    %140 = vset.pattern.permute.xlu0 0
    %141 = vperm.xlu0 %140, %v139
    %v142 = vpop.permute.xlu0 %141
    %vm143 = vcmp.lt.s32.totalorder %v138, %v142
    %v144 = vsel %vm143, 1, 0
    %v145 = vcvt.s32.f32 %v144
    %v146 = vmul.f32 %v133, 1.442695
    %v147 = vpow.pop %v146
    %v148 = vmul.f32 %v136, 1.442695
    %v149 = vpow.pop %v148
    %v151 = vlaneseq
    %v152 = vshrl.u32 %v151, 7
    %v153 = vsub.s32 0, %v152
    %v154 = vrot.slane %v145, %v153
    %156 = vbcast.lane.b32.xlu0 %v154, 256
    %v157 = vpop.permute.xlu0 %156
    %v158 = vlaneseq
    %v159 = vshrl.u32 %v158, 7
    %v160 = vsub.s32 1, %v159
    %v161 = vrot.slane %v145, %v160
    %163 = vbcast.lane.b32.xlu0 %v161, 256
    %v164 = vpop.permute.xlu0 %163
    %v167 = vmul.f32 %v147, %v157
    %v168 = vmul.f32 %v149, %v164
    %171 = vset.pattern.permute.xlu0 0
    %172 = vperm.xlu0 %171, %v167
    %v173 = vpop.permute.xlu0 %172
    %174 = vset.pattern.permute.xlu0 0
    %175 = vperm.xlu0 %174, %v168
    %v176 = vpop.permute.xlu0 %175
    %v177 = vlaneseq
    %v178 = vshrl.u32 %v177, 7
    %v179 = vsub.s32 %v138, %v178
    %v180 = vrot.slane %v173, %v179
    %v181 = vlaneseq
    %v182 = vshrl.u32 %v181, 7
    %v183 = vsub.s32 %v138, %v182
    %v184 = vrot.slane %v176, %v183
    %vm185 = vcmask 1041409
    %v186 = vsel %vm185, %v184, %v180
    %vm188 = vcmask 58368
    %v189 = vsel %vm188, %v186, 0.0
    %190 = vadd.xlane.f32.xlu0 %v189
    %v191 = vpop.xlane.xlu0 %190
    %v192 = vrcp.pop %v191
    %v194 = vlaneseq
    %v195 = vshrl.u32 %v194, 7
    %v196 = vsub.s32 0, %v195
    %v197 = vrot.slane %v192, %v196
    %v198 = vlaneseq
    %v199 = vshrl.u32 %v198, 7
    %v200 = vsub.s32 1, %v199
    %v201 = vrot.slane %v192, %v200
    %v204 = vmul.f32 %v167, %v197
    %v205 = vmul.f32 %v168, %v201
    %207 = vset.pattern.permute.xlu0 0
    %208 = vperm.xlu0 %207, %v204
    %v209 = vpop.permute.xlu0 %208
    %212 = vset.pattern.permute.xlu0 0
    %213 = vperm.xlu0 %212, %v205
    %v214 = vpop.permute.xlu0 %213
    %v216 = vmul.f32 %v209, %v24
    %v217 = vmul.f32 %v214, %v25
    %v218 = vsel %vm37, %v216, 0.0
    %v219 = vrot.slane %v218, 4
    %v220 = vadd.f32 %v218, %v219
    %v221 = vrot.slane %v220, 2
    %v222 = vadd.f32 %v220, %v221
    %v223 = vrot.slane %v222, 1
    %v224 = vadd.f32 %v222, %v223
    %v225 = vsel %vm37, %v217, 0.0
    %v226 = vrot.slane %v225, 4
    %v227 = vadd.f32 %v225, %v226
    %v228 = vrot.slane %v227, 2
    %v229 = vadd.f32 %v227, %v228
    %v230 = vrot.slane %v229, 1
    %v231 = vadd.f32 %v229, %v230
    %v234 = vsel %vm185, %v231, %v224
    %vm236 = vcmask 254976
    %237 = vst.msk [vmem:[#allocation2] sm:$0x3] %vm236, %v234
    %v238 = vlaneseq
    %v239 = vshrl.u32 %v238, 7
    %v240 = vsub.s32 %v138, %v239
    %v241 = vrot.slane %v209, %v240
    %v242 = vlaneseq
    %v243 = vshrl.u32 %v242, 7
    %v244 = vsub.s32 %v138, %v243
    %v245 = vrot.slane %v214, %v244
    %v246 = vsel %vm185, %v245, %v241
    %248 = vst.msk [vmem:[#allocation4] sm:$0x3] %vm188, %v246
    // Predicated region
    $region22: #{attention_with_context.1} parent=1 // pred_check
      _
    $region23: #{attention_with_context.1} parent=1 // pred_check_branch
      %250 = sbr.rel (0) target = $region25
    $region24: #{attention_with_context.1} parent=1 // pred_region
      %s252 = ssub.s32 32, 32
      %253 = vsyncadd [#allocation3], %s252
      %s255 = sshll.u32 [#allocation2], 4
      %s256 = int_to_ptr.vmem [resolvable:$true] %s255
      %258 = dma.vmem_to_hbm [thread:$0]  %s256, 32, %s5, [#allocation3]
    $region25: #{attention_with_context.1} parent=1 // pred_fallthru
      _
    // Predicated region
    $region26: #{attention_with_context.1} parent=1 // pred_check
      _
    $region27: #{attention_with_context.1} parent=1 // pred_check_branch
      %260 = sbr.rel (0) target = $region29
    $region28: #{attention_with_context.1} parent=1 // pred_region
      %s262 = ssub.s32 32, 32
      %263 = vsyncadd [#allocation5], %s262
      %s265 = sshll.u32 [#allocation4], 4
      %s266 = int_to_ptr.vmem [resolvable:$true] %s265
      %268 = dma.vmem_to_hbm [thread:$0]  %s266, 32, %s6, [#allocation5]
    $region29: #{attention_with_context.1} parent=1 // pred_fallthru
      _
    // Predicated region
    $region30: #{attention_with_context.1} parent=1 // pred_check
      _
    $region31: #{attention_with_context.1} parent=1 // pred_check_branch
      %270 = sbr.rel (0) target = $region33
    $region32: #{attention_with_context.1} parent=1 // pred_region
      %271 = dma.done [#allocation3], 32
    $region33: #{attention_with_context.1} parent=1 // pred_fallthru
      _
    // Predicated region
    $region34: #{attention_with_context.1} parent=1 // pred_check
      _
    $region35: #{attention_with_context.1} parent=1 // pred_check_branch
      %273 = sbr.rel (0) target = $region37
    $region36: #{attention_with_context.1} parent=1 // pred_region
      %274 = dma.done [#allocation5], 32
    $region37: #{attention_with_context.1} parent=1 // pred_fallthru
      _
    %275 = vsyncpa [#allocation3], 1
    %276 = vsyncpa [#allocation5], 1

</llo_original>
